<compile_context>
chip_gen: v6e
topology: v6e:2x2x1
jax: 0.10.0
libtpu: 0.0.40
codegen_flags: <defaults>
</compile_context>

<pallas_src>
import jax
import jax.numpy as jnp
from jax.experimental import pallas as pl
from jax.experimental.pallas import tpu as pltpu

# ----------------------------- configuration -------------------------------
B = 2          # batch
L = 16         # sequence length (leading dims are arbitrary for FeedForward)
DIM = 64       # in_features
HIDDEN = 128   # out_features -- multiple of 128 => lane-dense output stores

TM_MAX = 2048                       # row tile when B*L is large
VMEM_LIMIT_BYTES = 48 * 1024 * 1024  # explicit scoped-VMEM budget


# ------------------------------- kernel ------------------------------------
def ff_kernel(x_ref, w_ref, b_ref, o_ref):
    # nn.Dropout is identity in eval mode (no masking needed).
    # x/w are bf16; accumulate in f32 on the MXU, bias add in f32.
    y = jnp.dot(x_ref[...], w_ref[...], preferred_element_type=jnp.float32)
    o_ref[...] = (y + b_ref[...]).astype(o_ref.dtype)


# --------------------------- parameter plumbing ------------------------------
def init_feedforward_params(w_pt, b_pt):
    """One-time prep at parameter-load time (NOT per forward call):
    PyTorch (out, in) weight -> (in, out) bf16; bias (out,) -> (1, out) f32."""
    w = jnp.asarray(w_pt).T.astype(jnp.bfloat16)          # (dim, hidden)
    b = jnp.asarray(b_pt).reshape(1, -1).astype(jnp.float32)  # (1, hidden)
    return w, b


# ------------------------------- wrapper ------------------------------------
@jax.jit
def feedforward_forward(x, w, b):
    """x: (..., dim); w: (dim, hidden) bf16; b: (1, hidden) f32."""
    lead = x.shape[:-1]
    dim = x.shape[-1]
    hid = w.shape[1]

    # Fold all leading dims into rows; bf16 read stream for the MXU.
    x2 = x.reshape(-1, dim).astype(jnp.bfloat16)           # (M, dim)
    m = x2.shape[0]

    # One full-slab grid step when small; 2048-row tiles on a "parallel" axis
    # when M is large.  No padding: Pallas masks the boundary block's stores.
    tm = m if m <= TM_MAX else TM_MAX
    grid_m = pl.cdiv(m, tm)

    out = pl.pallas_call(
        ff_kernel,
        out_shape=jax.ShapeDtypeStruct((m, hid), jnp.float32),
        grid_spec=pltpu.PrefetchScalarGridSpec(
            num_scalar_prefetch=0,
            grid=(grid_m,),
            in_specs=[
                pl.BlockSpec((tm, dim), lambda i: (i, 0)),   # activations
                pl.BlockSpec((dim, hid), lambda i: (0, 0)),  # weight (in x out)
                pl.BlockSpec((1, hid), lambda i: (0, 0)),    # bias
            ],
            out_specs=pl.BlockSpec((tm, hid), lambda i: (i, 0)),
        ),
        compiler_params=pltpu.CompilerParams(
            dimension_semantics=("parallel",),
            vmem_limit_bytes=VMEM_LIMIT_BYTES,
        ),
    )(x2, w, b)

    return out.reshape(*lead, hid)


# --------------------------------- main --------------------------------------
if __name__ == "__main__":
    key = jax.random.PRNGKey(0)
    kx, kw, kb = jax.random.split(key, 3)

    x = jax.random.normal(kx, (B, L, DIM), dtype=jnp.float32)
    # Parameters in PyTorch nn.Linear layout: weight (out, in), bias (out,)
    w_pt = 0.1 * jax.random.normal(kw, (HIDDEN, DIM), dtype=jnp.float32)
    b_pt = 0.1 * jax.random.normal(kb, (HIDDEN,), dtype=jnp.float32)

    # One-time layout/dtype plumbing (simulates module init / param load).
    w, b = init_feedforward_params(w_pt, b_pt)

    out = feedforward_forward(x, w, b)
    out = jax.block_until_ready(out)

    # Pure-JAX reference: Dropout(eval) is identity, then Linear (f32).
    ref = x @ w_pt.T + b_pt

    assert out.shape == (B, L, HIDDEN), out.shape
    # bf16 operands => loosened tolerance vs the f32 reference.
    assert jnp.allclose(out, ref, atol=2e-2, rtol=2e-2), (
        float(jnp.max(jnp.abs(out - ref))))

    print("KERNEL_OK")
</pallas_src>

<mosaic_0001>
module attributes {stable_mosaic.version = 11 : i64} {
  func.func @ff_kernel(%arg0: i32, %arg1: memref<32x64xbf16, #tpu.memory_space<vmem>>, %arg2: memref<64x128xbf16, #tpu.memory_space<vmem>>, %arg3: memref<1x128xf32, #tpu.memory_space<vmem>>, %arg4: memref<32x128xf32, #tpu.memory_space<vmem>>) attributes {dimension_semantics = [#tpu.dimension_semantics<parallel>], iteration_bounds = array<i64: 1>, scalar_prefetch = 0 : i64, scratch_operands = 0 : i64, tpu.core_type = #tpu.core_type<tc>, window_params = [{transform_indices = @transform_0, window_bounds = array<i64: 32, 64>}, {pipeline_mode = #tpu.pipeline_mode<synchronous>, transform_indices = @transform_1, window_bounds = array<i64: 64, 128>}, {pipeline_mode = #tpu.pipeline_mode<synchronous>, transform_indices = @transform_2, window_bounds = array<i64: 1, 128>}, {transform_indices = @transform_3, window_bounds = array<i64: 32, 128>}]} {
    %c0 = arith.constant 0 : index
    %c0_0 = arith.constant 0 : index
    %0 = vector.load %arg1[%c0, %c0_0] : memref<32x64xbf16, #tpu.memory_space<vmem>>, vector<32x64xbf16>
    %c0_1 = arith.constant 0 : index
    %c0_2 = arith.constant 0 : index
    %1 = vector.load %arg2[%c0_1, %c0_2] : memref<64x128xbf16, #tpu.memory_space<vmem>>, vector<64x128xbf16>
    %cst = arith.constant dense<0.000000e+00> : vector<32x128xf32>
    %2 = tpu.matmul %0, %1, %cst {dimension_numbers = #tpu.dot_dimension_numbers<[1], [0], [0], [1], [0, 0, 1, 1], [], []>} : vector<32x64xbf16>, vector<64x128xbf16>, vector<32x128xf32> -> vector<32x128xf32>
    %c0_3 = arith.constant 0 : index
    %c0_4 = arith.constant 0 : index
    %3 = vector.load %arg3[%c0_3, %c0_4] : memref<1x128xf32, #tpu.memory_space<vmem>>, vector<1x128xf32>
    %4 = vector.broadcast %3 : vector<1x128xf32> to vector<32x128xf32>
    %5 = arith.addf %2, %4 : vector<32x128xf32>
    %c0_5 = arith.constant 0 : index
    %c0_6 = arith.constant 0 : index
    %6 = vector.load %arg4[%c0_5, %c0_6] : memref<32x128xf32, #tpu.memory_space<vmem>>, vector<32x128xf32>
    tpu.vector_store %arg4[%c0_5, %c0_6], %5 {strides = array<i32>} : memref<32x128xf32, #tpu.memory_space<vmem>>, vector<32x128xf32>,
    return
  }
  func.func @transform_0(%arg0: i32) -> (i32, i32) {
    %c0_i32 = arith.constant 0 : i32
    %c0_i32_0 = arith.constant 0 : i32
    return %arg0, %c0_i32 : i32, i32
  }
  func.func @transform_1(%arg0: i32) -> (i32, i32) {
    %c0_i32 = arith.constant 0 : i32
    %c0_i32_0 = arith.constant 0 : i32
    %c0_i32_1 = arith.constant 0 : i32
    return %c0_i32, %c0_i32_0 : i32, i32
  }
  func.func @transform_2(%arg0: i32) -> (i32, i32) {
    %c0_i32 = arith.constant 0 : i32
    %c0_i32_0 = arith.constant 0 : i32
    %c0_i32_1 = arith.constant 0 : i32
    return %c0_i32, %c0_i32_0 : i32, i32
  }
  func.func @transform_3(%arg0: i32) -> (i32, i32) {
    %c0_i32 = arith.constant 0 : i32
    %c0_i32_0 = arith.constant 0 : i32
    return %arg0, %c0_i32 : i32, i32
  }
}

</mosaic_0001>

<llo_original>
// kernel: feedforward_forward.1
$region0: #{feedforward_forward.1}
  #allocation0 [shape = 'u32[]', space=smem, size = 0x4, offset = 0x4, fixed_abs, tag = 'smem constant byte address 0x4 - core index']
  #allocation1 [shape = 'u32[144,128]{1,0:T(1,128)}', space=vmem, size = 0x12000, scoped, tag = 'internal scratch']
  %s0 = inlined_call_operand.vmem [shape: bf16[32,64], index: 0, kind: input, shape index: {}]
  %s1 = inlined_call_operand.vmem [shape: bf16[64,128], index: 1, kind: input, shape index: {}]
  %s2 = inlined_call_operand.vmem [shape: f32[1,128], index: 2, kind: input, shape index: {}]
  %s3 = inlined_call_operand.hbm [shape: f32[32,128], index: 3, kind: output, shape index: {}]
  %s4 = sld [smem:[#allocation0]]
  $region22: #{feedforward_forward.1} parent=0
    _
  %s6 = ssub.s32 1, %s4
  %s7 = scalar_select 0, %s6, %s4
  $region1: #{feedforward_forward.1} parent=0
    #allocation2 [shape = 'u8[16384]{0}', space=vmem, size = 0x4000, scoped, tag = 'output window, operand 0, single buffered']
    #allocation3 [shape = 's32[1]{0}', space=sflag, size = 0x4, scoped, tag = 'scoped memory for feedforward_forward.1']
    %8 = vsyncpa [#allocation3], 0
    // Predicated region
    $region2: #{feedforward_forward.1} parent=1 // pred_check
      _
    $region3: #{feedforward_forward.1} parent=1 // pred_check_branch
      %10 = sbr.rel (0) target = $region5
    $region4: #{feedforward_forward.1} parent=1 // pred_region
      _
    $region5: #{feedforward_forward.1} parent=1 // pred_fallthru
      _
    // Predicated region
    $region6: #{feedforward_forward.1} parent=1 // pred_check
      _
    $region7: #{feedforward_forward.1} parent=1 // pred_check_branch
      %12 = sbr.rel (0) target = $region9
    $region8: #{feedforward_forward.1} parent=1 // pred_region
      _
    $region9: #{feedforward_forward.1} parent=1 // pred_fallthru
      _
    // Predicated region
    $region10: #{feedforward_forward.1} parent=1 // pred_check
      _
    $region11: #{feedforward_forward.1} parent=1 // pred_check_branch
      %14 = sbr.rel (0) target = $region13
    $region12: #{feedforward_forward.1} parent=1 // pred_region
      _
    $region13: #{feedforward_forward.1} parent=1 // pred_fallthru
      _
    %v16 = vld [vmem:[%s0] sm:$0xf]
    %v17 = vld [vmem:[%s0 + $0x4] sm:$0xf]
    %v18 = vld [vmem:[%s0 + $0x8] sm:$0xf]
    %v19 = vld [vmem:[%s0 + $0xc] sm:$0xf]
    %v20 = vld [vmem:[%s1] sm:$0xf]
    %v21 = vld [vmem:[%s1 + $0x4] sm:$0xf]
    %v22 = vld [vmem:[%s1 + $0x8] sm:$0xf]
    %v23 = vld [vmem:[%s1 + $0xc] sm:$0xf]
    %v24 = vld [vmem:[%s1 + $0x10] sm:$0xf]
    %v25 = vld [vmem:[%s1 + $0x14] sm:$0xf]
    %v26 = vld [vmem:[%s1 + $0x18] sm:$0xf]
    %v27 = vld [vmem:[%s1 + $0x1c] sm:$0xf]
    %v28 = vld [vmem:[%s2] sm:$0x1]
    %v30 = vlaneseq
    %v31 = vshrl.u32 %v30, 7
    %v32 = vsub.s32 0, %v31
    %v33 = vrot.slane %v28, %v32
    %v39 = vunpack.c.l.b16 %v16
    %v40 = vunpack.c.l.b16 %v17
    %v41 = vunpack.c.l.b16 %v18
    %v42 = vunpack.c.l.b16 %v19
    %v43 = vpack.c.b16 %v40, %v39
    %v44 = vpack.c.b16 %v42, %v41
    %v53 = vunpack.c.l.b16 %v20
    %v54 = vunpack.c.l.b16 %v21
    %v55 = vunpack.c.l.b16 %v22
    %v56 = vunpack.c.l.b16 %v23
    %v57 = vunpack.c.l.b16 %v24
    %v58 = vunpack.c.l.b16 %v25
    %v59 = vunpack.c.l.b16 %v26
    %v60 = vunpack.c.l.b16 %v27
    %v61 = vpack.c.b16 %v54, %v53
    %v62 = vpack.c.b16 %v56, %v55
    %v63 = vpack.c.b16 %v58, %v57
    %v64 = vpack.c.b16 %v60, %v59
    %vm69 = vcmask 523264
    %v71 = vsel %vm69, %v43, 0
    %v74 = vsel %vm69, %v44, 0
    %76 = vmatprep.subr.bf16.mxu0 0
    %77 = vmatpush1.bf16.msra.mxu0 0
    %78 = vmatprep.subr.bf16.mxu0 0
    %79 = vmatpush1.bf16.msra.mxu0 0
    %80 = vmatprep.subr.bf16.mxu0 0
    %81 = vmatpush1.bf16.msra.mxu0 0
    %82 = vmatprep.subr.bf16.mxu0 0
    %83 = vmatpush1.bf16.msra.mxu0 0
    %84 = vmatprep.subr.bf16.mxu0 0
    %85 = vmatpush1.bf16.msra.mxu0 %v64
    %86 = vmatprep.subr.bf16.mxu0 0
    %87 = vmatpush1.bf16.msra.mxu0 %v63
    %88 = vmatprep.subr.bf16.mxu0 0
    %89 = vmatpush1.bf16.msra.mxu0 %v62
    %90 = vmatprep.subr.bf16.mxu0 0
    %91 = vmatpush1.bf16.msra.mxu0 %v61
    %92 = vmatprep.subr.bf16.mxu0 0
    %93 = vmatpush2.bf16.msra.mxu0 0
    %94 = vmatprep.subr.bf16.mxu0 0
    %95 = vmatpush2.bf16.msra.mxu0 0
    %96 = vmatprep.subr.bf16.mxu0 0
    %97 = vmatpush2.bf16.msra.mxu0 0
    %98 = vmatprep.subr.bf16.mxu0 0
    %99 = vmatpush2.bf16.msra.mxu0 0
    %100 = vmatprep.subr.bf16.mxu0 0
    %101 = vmatpush2.bf16.msra.mxu0 0
    %102 = vmatprep.subr.bf16.mxu0 0
    %103 = vmatpush2.bf16.msra.mxu0 0
    %104 = vmatprep.subr.bf16.mxu0 0
    %105 = vmatpush2.bf16.msra.mxu0 0
    %106 = vmatprep.subr.bf16.mxu0 0
    %107 = vmatpush2.bf16.msra.mxu0 0
    %108 = vmatprep.mubr.bf16.mxu0 0
    %109 = vmatmul.mubr.bf16.gmra.mxu0 %v71
    %v110 = vpop.f32.mrf.mxu0
    %v111 = vadd.f32 %v33, %v110
    %v112 = vpop.f32.mrf.mxu0
    %v113 = vpop.f32.mrf.mxu0
    %v114 = vadd.f32 %v33, %v113
    %v115 = vpop.f32.mrf.mxu0
    %116 = vmatprep.mubr.bf16.mxu0 0
    %117 = vmatmul.mubr.bf16.gmra.mxu0 %v74
    %v118 = vpop.f32.mrf.mxu0
    %v119 = vadd.f32 %v33, %v118
    %v120 = vpop.f32.mrf.mxu0
    %v121 = vpop.f32.mrf.mxu0
    %v122 = vadd.f32 %v33, %v121
    %v123 = vpop.f32.mrf.mxu0
    %124 = vdwg.mxu0
    %125 = vst [vmem:[#allocation2] sm:$0xff] %v111
    %126 = vst [vmem:[#allocation2 + $0x8] sm:$0xff] %v114
    %127 = vst [vmem:[#allocation2 + $0x10] sm:$0xff] %v119
    %128 = vst [vmem:[#allocation2 + $0x18] sm:$0xff] %v122
    // Predicated region
    $region14: #{feedforward_forward.1} parent=1 // pred_check
      _
    $region15: #{feedforward_forward.1} parent=1 // pred_check_branch
      %130 = sbr.rel (0) target = $region17
    $region16: #{feedforward_forward.1} parent=1 // pred_region
      %s132 = ssub.s32 512, 512
      %133 = vsyncadd [#allocation3], %s132
      %s134 = sshll.u32 [#allocation2], 4
      %s135 = int_to_ptr.vmem [resolvable:$true] %s134
      %140 = dma.vmem_to_hbm [thread:$0]  %s135, 512, %s3, [#allocation3], 128, 128, 8
    $region17: #{feedforward_forward.1} parent=1 // pred_fallthru
      _
    // Predicated region
    $region18: #{feedforward_forward.1} parent=1 // pred_check
      _
    $region19: #{feedforward_forward.1} parent=1 // pred_check_branch
      %142 = sbr.rel (0) target = $region21
    $region20: #{feedforward_forward.1} parent=1 // pred_region
      %143 = dma.done [#allocation3], 512
    $region21: #{feedforward_forward.1} parent=1 // pred_fallthru
      _
    %144 = vsyncpa [#allocation3], 1

</llo_original>
